<compile_context>
chip_gen: v7x
topology: tpu7x:2x2x1
jax: 0.10.0
libtpu: 0.0.40
codegen_flags: <defaults>
</compile_context>

<pallas_src>
import functools

import jax
import jax.numpy as jnp
from jax.experimental import pallas as pl
from jax.experimental.pallas import tpu as pltpu


def _round_up(x, m):
    return -(-x // m) * m


def _tpu_hw_info():
    """Returns (vmem_capacity_bytes, num_tensorcores) with conservative fallbacks."""
    vmem = 64 * 1024 * 1024   # conservative: v7x has the smallest VMEM (64 MiB/TC)
    cores = 1
    try:
        info = pltpu.get_tpu_info()
        for name in ("vmem_capacity_bytes", "vmem_size_bytes", "vmem_bytes"):
            v = getattr(info, name, None)
            if v:
                vmem = int(v)
                break
        for name in ("num_cores", "tensorcore_count", "num_tensorcores", "core_count"):
            c = getattr(info, name, None)
            if c:
                cores = int(c)
                break
    except Exception:
        pass
    return vmem, cores


def _mlp_kernel(x_ref, w1_ref, b1_ref, w2_ref, b2_ref, w3_ref, b3_ref, o_ref):
    # Cast x after load so the HBM->VMEM DMA stays in the caller's dtype and the bf16
    # path needs no extra wrapper pass over x.  All accumulation / elementwise is fp32.
    x = x_ref[...].astype(w1_ref.dtype)
    h = jnp.dot(x, w1_ref[...], preferred_element_type=jnp.float32)
    h = jnp.maximum(h + b1_ref[...], 0.0)
    h = jnp.dot(h.astype(w2_ref.dtype), w2_ref[...], preferred_element_type=jnp.float32)
    h = jnp.maximum(h + b2_ref[...], 0.0)
    out = jnp.dot(h.astype(w3_ref.dtype), w3_ref[...], preferred_element_type=jnp.float32)
    o_ref[...] = (out + b3_ref[...]).astype(o_ref.dtype)


@functools.partial(jax.jit, static_argnames=("block_m", "use_bf16"))
def model_mlp_forward(x, w1, b1, w2, b2, w3, b3, *, block_m=None, use_bf16=False):
    """Fused MLP forward. x: [B, input_dim] -> [B, n_quantiles]."""
    out_dtype = x.dtype
    B, input_dim = x.shape
    n_hidden = w1.shape[1]
    n_quantiles = w3.shape[1]

    # Optional bf16 operands: only the small loop-invariant weights are cast here
    # (cheap, one-time); x is cast inside the kernel.  Biases stay fp32.
    if use_bf16:
        w1 = w1.astype(jnp.bfloat16)
        w2 = w2.astype(jnp.bfloat16)
        w3 = w3.astype(jnp.bfloat16)
    b1 = b1.astype(jnp.float32)
    b2 = b2.astype(jnp.float32)
    b3 = b3.astype(jnp.float32)

    x_item = jnp.dtype(x.dtype).itemsize
    w_item = jnp.dtype(w1.dtype).itemsize
    out_item = jnp.dtype(out_dtype).itemsize

    # Sublane granularity derives from the dtype actually fed to the kernel (x.dtype).
    sublane = 8 * max(1, 4 // x_item)

    # Tiny-batch corner case only: pad up to one sublane group so every block shape is
    # valid; large / ragged batches rely on Pallas partial-block masking instead.
    pad_rows = 0
    if B < sublane:
        pad_rows = sublane - B
        x = jnp.pad(x, ((0, pad_rows), (0, 0)))
    B_eff = B + pad_rows

    # --- per-generation VMEM budget ------------------------------------------------
    vmem_capacity, num_cores = _tpu_hw_info()
    budget = max(32 << 20, int(0.7 * vmem_capacity))

    weight_bytes = ((input_dim * n_hidden + n_hidden * n_hidden
                     + n_hidden * n_quantiles) * w_item
                    + (2 * n_hidden + n_quantiles) * 4)
    # Loop-invariant weights: single-buffer them once they are big enough to matter.
    buffer_invariants_once = weight_bytes > (8 << 20)
    wbuf = 1 if buffer_invariants_once else 2

    # Per-row VMEM bytes: double-buffered x/out tiles + fp32 intermediates headroom.
    row_bytes = 2 * (input_dim * x_item + n_quantiles * out_item) + 3 * n_hidden * 4
    max_rows_vmem = (budget - wbuf * weight_bytes) // max(row_bytes, 1)

    # --- batch tile selection --------------------------------------------------------
    if block_m is None:
        cap_rows = max(sublane, min(8192, int(max_rows_vmem)))
        cap_rows = (cap_rows // sublane) * sublane
        num_steps = pl.cdiv(B_eff, cap_rows)
        # Megacore (v7x): make the parallel grid axis shard evenly across TCs when B is
        # large enough to be worth splitting; 1-TC chips just minimize step count.
        if num_cores > 1 and B_eff >= num_cores * 1024:
            num_steps = _round_up(max(num_steps, num_cores), num_cores)
        block_m = _round_up(pl.cdiv(B_eff, num_steps), sublane)
    else:
        block_m = _round_up(int(block_m), sublane)
    # Keep every block no larger than the array's row extent (trailing block may still
    # be partial; Pallas masks it).
    block_m = max(sublane, min(block_m, (B_eff // sublane) * sublane))
    num_steps = pl.cdiv(B_eff, block_m)

    # --- specs -----------------------------------------------------------------------
    def _invariant_spec(shape):
        if buffer_invariants_once:
            return pl.BlockSpec(shape, lambda i: (0, 0), pipeline_mode=pl.Buffered(1))
        return pl.BlockSpec(shape, lambda i: (0, 0))

    in_specs = [
        pl.BlockSpec((block_m, input_dim), lambda i: (i, 0)),      # x tile
        _invariant_spec((input_dim, n_hidden)),                    # w1
        _invariant_spec((1, n_hidden)),                            # b1
        _invariant_spec((n_hidden, n_hidden)),                     # w2
        _invariant_spec((1, n_hidden)),                            # b2
        _invariant_spec((n_hidden, n_quantiles)),                  # w3
        _invariant_spec((1, n_quantiles)),                         # b3
    ]
    out_specs = pl.BlockSpec((block_m, n_quantiles), lambda i: (i, 0))

    # Explicit scoped-VMEM limit sized from the actual footprint (headroom included),
    # never exceeding ~90% of physical capacity.
    vmem_needed = (wbuf * weight_bytes
                   + 2 * block_m * (input_dim * x_item + n_quantiles * out_item)
                   + 4 * block_m * n_hidden * 4)
    vmem_limit = int(min(0.9 * vmem_capacity, max(32 << 20, int(1.25 * vmem_needed))))

    # Advisory cost estimate for the surrounding XLA graph.
    flops = 2 * B_eff * (input_dim * n_hidden + n_hidden * n_hidden
                         + n_hidden * n_quantiles)
    bytes_accessed = sum(int(a.size) * a.dtype.itemsize
                         for a in (x, w1, b1, w2, b2, w3, b3))
    bytes_accessed += B_eff * n_quantiles * out_item
    cost = pl.CostEstimate(flops=flops, transcendentals=0,
                           bytes_accessed=bytes_accessed)

    out = pl.pallas_call(
        _mlp_kernel,
        out_shape=jax.ShapeDtypeStruct((B_eff, n_quantiles), out_dtype),
        grid_spec=pl.GridSpec(
            grid=(num_steps,),
            in_specs=in_specs,
            out_specs=out_specs,
        ),
        compiler_params=pltpu.CompilerParams(
            dimension_semantics=("parallel",),
            vmem_limit_bytes=vmem_limit,
        ),
        cost_estimate=cost,
    )(x, w1, b1, w2, b2, w3, b3)

    return out[:B] if pad_rows else out


def _reference_forward(x, w1, b1, w2, b2, w3, b3):
    h = jnp.maximum(x @ w1 + b1, 0.0)
    h = jnp.maximum(h @ w2 + b2, 0.0)
    return h @ w3 + b3


if __name__ == "__main__":
    # Small shapes consistent with the module: batch=16, input_dim=16,
    # n_hidden=32, n_quantiles=8.
    B, input_dim, n_hidden, n_quantiles = 16, 16, 32, 8

    key = jax.random.PRNGKey(0)
    kx, k1, k2, k3, k4, k5, k6, kbig = jax.random.split(key, 8)

    x = jax.random.normal(kx, (B, input_dim), dtype=jnp.float32)
    w1 = jax.random.normal(k1, (input_dim, n_hidden), dtype=jnp.float32) * 0.1
    b1 = jax.random.normal(k2, (1, n_hidden), dtype=jnp.float32) * 0.1
    w2 = jax.random.normal(k3, (n_hidden, n_hidden), dtype=jnp.float32) * 0.1
    b2 = jax.random.normal(k4, (1, n_hidden), dtype=jnp.float32) * 0.1
    w3 = jax.random.normal(k5, (n_hidden, n_quantiles), dtype=jnp.float32) * 0.1
    b3 = jax.random.normal(k6, (1, n_quantiles), dtype=jnp.float32) * 0.1

    ref = _reference_forward(x, w1, b1, w2, b2, w3, b3)

    # fp32 path: single grid step, exact match vs reference.
    out = jax.block_until_ready(model_mlp_forward(x, w1, b1, w2, b2, w3, b3))
    assert out.shape == (B, n_quantiles)
    assert jnp.allclose(out, ref, atol=1e-5, rtol=1e-5), "fp32 Pallas output mismatch"

    # ragged batch path: no wrapper pad/slice, Pallas masks the partial last block.
    out_ragged = jax.block_until_ready(
        model_mlp_forward(x[:13], w1, b1, w2, b2, w3, b3))
    assert out_ragged.shape == (13, n_quantiles)
    assert jnp.allclose(out_ragged, ref[:13], atol=1e-5, rtol=1e-5), "ragged mismatch"

    # multi-step grid + partial trailing block (exercises the pipelined path).
    Bm = 200
    xm = jax.random.normal(kbig, (Bm, input_dim), dtype=jnp.float32)
    refm = _reference_forward(xm, w1, b1, w2, b2, w3, b3)
    outm = jax.block_until_ready(
        model_mlp_forward(xm, w1, b1, w2, b2, w3, b3, block_m=64))
    assert outm.shape == (Bm, n_quantiles)
    assert jnp.allclose(outm, refm, atol=1e-5, rtol=1e-5), "multi-step mismatch"

    # bf16-operand path (fp32 accumulation, weights cast once, x cast in-kernel).
    out_bf16 = jax.block_until_ready(
        model_mlp_forward(x, w1, b1, w2, b2, w3, b3, use_bf16=True))
    assert out_bf16.shape == (B, n_quantiles)
    assert jnp.allclose(out_bf16, ref, atol=5e-2, rtol=5e-2), "bf16 Pallas output mismatch"

    print("KERNEL_OK")
</pallas_src>

<mosaic_0001>
module attributes {stable_mosaic.version = 11 : i64} {
  func.func @_mlp_kernel(%arg0: i32, %arg1: memref<16x16xf32, #tpu.memory_space<vmem>>, %arg2: memref<16x32xf32, #tpu.memory_space<vmem>>, %arg3: memref<1x32xf32, #tpu.memory_space<vmem>>, %arg4: memref<32x32xf32, #tpu.memory_space<vmem>>, %arg5: memref<1x32xf32, #tpu.memory_space<vmem>>, %arg6: memref<32x8xf32, #tpu.memory_space<vmem>>, %arg7: memref<1x8xf32, #tpu.memory_space<vmem>>, %arg8: memref<16x8xf32, #tpu.memory_space<vmem>>) attributes {dimension_semantics = [#tpu.dimension_semantics<parallel>], iteration_bounds = array<i64: 1>, scalar_prefetch = 0 : i64, scratch_operands = 0 : i64, tpu.core_type = #tpu.core_type<tc>, window_params = [{transform_indices = @transform_0, window_bounds = array<i64: 16, 16>}, {pipeline_mode = #tpu.pipeline_mode<synchronous>, transform_indices = @transform_1, window_bounds = array<i64: 16, 32>}, {pipeline_mode = #tpu.pipeline_mode<synchronous>, transform_indices = @transform_2, window_bounds = array<i64: 1, 32>}, {pipeline_mode = #tpu.pipeline_mode<synchronous>, transform_indices = @transform_3, window_bounds = array<i64: 32, 32>}, {pipeline_mode = #tpu.pipeline_mode<synchronous>, transform_indices = @transform_4, window_bounds = array<i64: 1, 32>}, {pipeline_mode = #tpu.pipeline_mode<synchronous>, transform_indices = @transform_5, window_bounds = array<i64: 32, 8>}, {pipeline_mode = #tpu.pipeline_mode<synchronous>, transform_indices = @transform_6, window_bounds = array<i64: 1, 8>}, {transform_indices = @transform_7, window_bounds = array<i64: 16, 8>}]} {
    %c0 = arith.constant 0 : index
    %c0_0 = arith.constant 0 : index
    %0 = vector.load %arg1[%c0, %c0_0] : memref<16x16xf32, #tpu.memory_space<vmem>>, vector<16x16xf32>
    %c0_1 = arith.constant 0 : index
    %c0_2 = arith.constant 0 : index
    %1 = vector.load %arg2[%c0_1, %c0_2] : memref<16x32xf32, #tpu.memory_space<vmem>>, vector<16x32xf32>
    %cst = arith.constant dense<0.000000e+00> : vector<16x32xf32>
    %2 = tpu.matmul %0, %1, %cst {dimension_numbers = #tpu.dot_dimension_numbers<[1], [0], [0], [1], [0, 0, 1, 1], [], []>} : vector<16x16xf32>, vector<16x32xf32>, vector<16x32xf32> -> vector<16x32xf32>
    %c0_3 = arith.constant 0 : index
    %c0_4 = arith.constant 0 : index
    %3 = vector.load %arg3[%c0_3, %c0_4] : memref<1x32xf32, #tpu.memory_space<vmem>>, vector<1x32xf32>
    %4 = vector.broadcast %3 : vector<1x32xf32> to vector<16x32xf32>
    %5 = arith.addf %2, %4 : vector<16x32xf32>
    %cst_5 = arith.constant 0.000000e+00 : f32
    %6 = vector.broadcast %cst_5 : f32 to vector<16x32xf32>
    %7 = arith.maximumf %5, %6 : vector<16x32xf32>
    %c0_6 = arith.constant 0 : index
    %c0_7 = arith.constant 0 : index
    %8 = vector.load %arg4[%c0_6, %c0_7] : memref<32x32xf32, #tpu.memory_space<vmem>>, vector<32x32xf32>
    %cst_8 = arith.constant dense<0.000000e+00> : vector<16x32xf32>
    %9 = tpu.matmul %7, %8, %cst_8 {dimension_numbers = #tpu.dot_dimension_numbers<[1], [0], [0], [1], [0, 0, 1, 1], [], []>} : vector<16x32xf32>, vector<32x32xf32>, vector<16x32xf32> -> vector<16x32xf32>
    %c0_9 = arith.constant 0 : index
    %c0_10 = arith.constant 0 : index
    %10 = vector.load %arg5[%c0_9, %c0_10] : memref<1x32xf32, #tpu.memory_space<vmem>>, vector<1x32xf32>
    %11 = vector.broadcast %10 : vector<1x32xf32> to vector<16x32xf32>
    %12 = arith.addf %9, %11 : vector<16x32xf32>
    %cst_11 = arith.constant 0.000000e+00 : f32
    %13 = vector.broadcast %cst_11 : f32 to vector<16x32xf32>
    %14 = arith.maximumf %12, %13 : vector<16x32xf32>
    %c0_12 = arith.constant 0 : index
    %c0_13 = arith.constant 0 : index
    %15 = vector.load %arg6[%c0_12, %c0_13] : memref<32x8xf32, #tpu.memory_space<vmem>>, vector<32x8xf32>
    %cst_14 = arith.constant dense<0.000000e+00> : vector<16x8xf32>
    %16 = tpu.matmul %14, %15, %cst_14 {dimension_numbers = #tpu.dot_dimension_numbers<[1], [0], [0], [1], [0, 0, 1, 1], [], []>} : vector<16x32xf32>, vector<32x8xf32>, vector<16x8xf32> -> vector<16x8xf32>
    %c0_15 = arith.constant 0 : index
    %c0_16 = arith.constant 0 : index
    %17 = vector.load %arg7[%c0_15, %c0_16] : memref<1x8xf32, #tpu.memory_space<vmem>>, vector<1x8xf32>
    %18 = vector.broadcast %17 : vector<1x8xf32> to vector<16x8xf32>
    %19 = arith.addf %16, %18 : vector<16x8xf32>
    %c0_17 = arith.constant 0 : index
    %c0_18 = arith.constant 0 : index
    %20 = vector.load %arg8[%c0_17, %c0_18] : memref<16x8xf32, #tpu.memory_space<vmem>>, vector<16x8xf32>
    tpu.vector_store %arg8[%c0_17, %c0_18], %19 {strides = array<i32>} : memref<16x8xf32, #tpu.memory_space<vmem>>, vector<16x8xf32>,
    return
  }
  func.func @transform_0(%arg0: i32) -> (i32, i32) {
    %c0_i32 = arith.constant 0 : i32
    %c0_i32_0 = arith.constant 0 : i32
    return %arg0, %c0_i32 : i32, i32
  }
  func.func @transform_1(%arg0: i32) -> (i32, i32) {
    %c0_i32 = arith.constant 0 : i32
    %c0_i32_0 = arith.constant 0 : i32
    %c0_i32_1 = arith.constant 0 : i32
    return %c0_i32, %c0_i32_0 : i32, i32
  }
  func.func @transform_2(%arg0: i32) -> (i32, i32) {
    %c0_i32 = arith.constant 0 : i32
    %c0_i32_0 = arith.constant 0 : i32
    %c0_i32_1 = arith.constant 0 : i32
    return %c0_i32, %c0_i32_0 : i32, i32
  }
  func.func @transform_3(%arg0: i32) -> (i32, i32) {
    %c0_i32 = arith.constant 0 : i32
    %c0_i32_0 = arith.constant 0 : i32
    %c0_i32_1 = arith.constant 0 : i32
    return %c0_i32, %c0_i32_0 : i32, i32
  }
  func.func @transform_4(%arg0: i32) -> (i32, i32) {
    %c0_i32 = arith.constant 0 : i32
    %c0_i32_0 = arith.constant 0 : i32
    %c0_i32_1 = arith.constant 0 : i32
    return %c0_i32, %c0_i32_0 : i32, i32
  }
  func.func @transform_5(%arg0: i32) -> (i32, i32) {
    %c0_i32 = arith.constant 0 : i32
    %c0_i32_0 = arith.constant 0 : i32
    %c0_i32_1 = arith.constant 0 : i32
    return %c0_i32, %c0_i32_0 : i32, i32
  }
  func.func @transform_6(%arg0: i32) -> (i32, i32) {
    %c0_i32 = arith.constant 0 : i32
    %c0_i32_0 = arith.constant 0 : i32
    %c0_i32_1 = arith.constant 0 : i32
    return %c0_i32, %c0_i32_0 : i32, i32
  }
  func.func @transform_7(%arg0: i32) -> (i32, i32) {
    %c0_i32 = arith.constant 0 : i32
    %c0_i32_0 = arith.constant 0 : i32
    return %arg0, %c0_i32 : i32, i32
  }
}

</mosaic_0001>

<llo_original>
// kernel: model_mlp_forward.1
$region0: #{model_mlp_forward.1}
  #allocation0 [shape = 'u32[]', space=smem, size = 0x4, offset = 0x4, fixed_abs, tag = 'smem constant byte address 0x4 - core index']
  #allocation1 [shape = 'u32[144,128]{1,0:T(1,128)}', space=vmem, size = 0x12000, scoped, tag = 'internal scratch']
  %s0 = inlined_call_operand.vmem [shape: f32[16,16], index: 0, kind: input, shape index: {}]
  %s1 = inlined_call_operand.hbm [shape: f32[16,32], index: 1, kind: input, shape index: {}]
  %s2 = inlined_call_operand.vmem [shape: f32[1,32], index: 2, kind: input, shape index: {}]
  %s3 = inlined_call_operand.vmem [shape: f32[32,32], index: 3, kind: input, shape index: {}]
  %s4 = inlined_call_operand.vmem [shape: f32[1,32], index: 4, kind: input, shape index: {}]
  %s5 = inlined_call_operand.vmem [shape: f32[32,8], index: 5, kind: input, shape index: {}]
  %s6 = inlined_call_operand.vmem [shape: f32[1,8], index: 6, kind: input, shape index: {}]
  %s7 = inlined_call_operand.vmem [shape: f32[16,8], index: 7, kind: output, shape index: {}]
  %s8 = sld [smem:[#allocation0]]
  $region42: #{model_mlp_forward.1} parent=0
    _
  %s10 = ssub.s32 1, %s8
  %s11 = scalar_select 0, %s10, %s8
  $region1: #{model_mlp_forward.1} parent=0
    #allocation2 [shape = 'u8[8192]{0}', space=vmem, size = 0x2000, scoped, tag = 'input window, operand 1, single buffered']
    #allocation3 [shape = 's32[1]{0}', space=sflag, size = 0x4, scoped, tag = 'scoped memory for model_mlp_forward.1']
    %12 = vsyncpa [#allocation3], 0
    // Predicated region
    $region2: #{model_mlp_forward.1} parent=1 // pred_check
      _
    $region3: #{model_mlp_forward.1} parent=1 // pred_check_branch
      %14 = sbr.rel (0) target = $region5
    $region4: #{model_mlp_forward.1} parent=1 // pred_region
      _
    $region5: #{model_mlp_forward.1} parent=1 // pred_fallthru
      _
    // Predicated region
    $region6: #{model_mlp_forward.1} parent=1 // pred_check
      _
    $region7: #{model_mlp_forward.1} parent=1 // pred_check_branch
      %16 = sbr.rel (0) target = $region9
    $region8: #{model_mlp_forward.1} parent=1 // pred_region
      %s18 = ssub.s32 256, 256
      %19 = vsyncadd [#allocation3], %s18
      %s20 = sshll.u32 [#allocation2], 4
      %s21 = int_to_ptr.vmem [resolvable:$true] %s20
      %26 = dma.hbm_to_vmem [thread:$0]  %s1, 256, %s21, [#allocation3], 128, 128, 8
    $region9: #{model_mlp_forward.1} parent=1 // pred_fallthru
      _
    // Predicated region
    $region10: #{model_mlp_forward.1} parent=1 // pred_check
      _
    $region11: #{model_mlp_forward.1} parent=1 // pred_check_branch
      %28 = sbr.rel (0) target = $region13
    $region12: #{model_mlp_forward.1} parent=1 // pred_region
      _
    $region13: #{model_mlp_forward.1} parent=1 // pred_fallthru
      _
    // Predicated region
    $region14: #{model_mlp_forward.1} parent=1 // pred_check
      _
    $region15: #{model_mlp_forward.1} parent=1 // pred_check_branch
      %30 = sbr.rel (0) target = $region17
    $region16: #{model_mlp_forward.1} parent=1 // pred_region
      _
    $region17: #{model_mlp_forward.1} parent=1 // pred_fallthru
      _
    // Predicated region
    $region18: #{model_mlp_forward.1} parent=1 // pred_check
      _
    $region19: #{model_mlp_forward.1} parent=1 // pred_check_branch
      %32 = sbr.rel (0) target = $region21
    $region20: #{model_mlp_forward.1} parent=1 // pred_region
      _
    $region21: #{model_mlp_forward.1} parent=1 // pred_fallthru
      _
    // Predicated region
    $region22: #{model_mlp_forward.1} parent=1 // pred_check
      _
    $region23: #{model_mlp_forward.1} parent=1 // pred_check_branch
      %34 = sbr.rel (0) target = $region25
    $region24: #{model_mlp_forward.1} parent=1 // pred_region
      _
    $region25: #{model_mlp_forward.1} parent=1 // pred_fallthru
      _
    // Predicated region
    $region26: #{model_mlp_forward.1} parent=1 // pred_check
      _
    $region27: #{model_mlp_forward.1} parent=1 // pred_check_branch
      %36 = sbr.rel (0) target = $region29
    $region28: #{model_mlp_forward.1} parent=1 // pred_region
      _
    $region29: #{model_mlp_forward.1} parent=1 // pred_fallthru
      _
    // Predicated region
    $region30: #{model_mlp_forward.1} parent=1 // pred_check
      _
    $region31: #{model_mlp_forward.1} parent=1 // pred_check_branch
      %38 = sbr.rel (0) target = $region33
    $region32: #{model_mlp_forward.1} parent=1 // pred_region
      %39 = dma.done [#allocation3], 256
    $region33: #{model_mlp_forward.1} parent=1 // pred_fallthru
      _
    %v40 = vld [vmem:[%s0] sm:$0xff]
    %v41 = vld [vmem:[%s0 + $0x8] sm:$0xff]
    %v42 = vld [vmem:[#allocation2] sm:$0xff]
    %v43 = vld [vmem:[#allocation2 + $0x8] sm:$0xff]
    %v44 = vld [vmem:[%s2] sm:$0x1]
    %v46 = vlaneseq
    %v47 = vshrl.u32 %v46, 7
    %v48 = vsub.s32 0, %v47
    %v49 = vrot.slane %v44, %v48
    %vm51 = vcmask 130048
    %v53 = vsel %vm51, %v40, 0
    %v56 = vsel %vm51, %v41, 0
    %58 = vmatprep.subr.mxu0 0.0
    %59 = vmatpush1.msra.mxu0 %v42
    %60 = vmatprep.subr.mxu0 0.0
    %61 = vmatpush1.msra.mxu0 %v43
    %62 = vmatprep.subr.mxu0 0.0
    %63 = vmatpush1.msra.mxu0 0.0
    %64 = vmatprep.subr.mxu0 0.0
    %65 = vmatpush1.msra.mxu0 0.0
    %66 = vmatprep.subr.mxu0 0.0
    %67 = vmatpush1.msra.mxu0 0.0
    %68 = vmatprep.subr.mxu0 0.0
    %69 = vmatpush1.msra.mxu0 0.0
    %70 = vmatprep.subr.mxu0 0.0
    %71 = vmatpush1.msra.mxu0 0.0
    %72 = vmatprep.subr.mxu0 0.0
    %73 = vmatpush1.msra.mxu0 0.0
    %74 = vmatprep.subr.mxu0 0.0
    %75 = vmatpush1.msra.mxu0 0.0
    %76 = vmatprep.subr.mxu0 0.0
    %77 = vmatpush1.msra.mxu0 0.0
    %78 = vmatprep.subr.mxu0 0.0
    %79 = vmatpush1.msra.mxu0 0.0
    %80 = vmatprep.subr.mxu0 0.0
    %81 = vmatpush1.msra.mxu0 0.0
    %82 = vmatprep.subr.mxu0 0.0
    %83 = vmatpush1.msra.mxu0 0.0
    %84 = vmatprep.subr.mxu0 0.0
    %85 = vmatpush1.msra.mxu0 0.0
    %86 = vmatprep.subr.mxu0 0.0
    %87 = vmatpush1.msra.mxu0 0.0
    %88 = vmatprep.subr.mxu0 0.0
    %89 = vmatpush1.msra.mxu0 0.0
    %90 = vmatprep.subr.mxu0 0.0
    %91 = vmatpush1.msra.mxu0 0.0
    %92 = vmatprep.subr.mxu0 0.0
    %93 = vmatpush1.msra.mxu0 0.0
    %94 = vmatprep.subr.mxu0 0.0
    %95 = vmatpush1.msra.mxu0 0.0
    %96 = vmatprep.subr.mxu0 0.0
    %97 = vmatpush1.msra.mxu0 0.0
    %98 = vmatprep.subr.mxu0 0.0
    %99 = vmatpush1.msra.mxu0 0.0
    %100 = vmatprep.subr.mxu0 0.0
    %101 = vmatpush1.msra.mxu0 0.0
    %102 = vmatprep.subr.mxu0 0.0
    %103 = vmatpush1.msra.mxu0 0.0
    %104 = vmatprep.subr.mxu0 0.0
    %105 = vmatpush1.msra.mxu0 0.0
    %106 = vmatprep.subr.mxu0 0.0
    %107 = vmatpush1.msra.mxu0 0.0
    %108 = vmatprep.subr.mxu0 0.0
    %109 = vmatpush1.msra.mxu0 0.0
    %110 = vmatprep.subr.mxu0 0.0
    %111 = vmatpush1.msra.mxu0 0.0
    %112 = vmatprep.subr.mxu0 0.0
    %113 = vmatpush1.msra.mxu0 0.0
    %114 = vmatprep.subr.mxu0 0.0
    %115 = vmatpush1.msra.mxu0 0.0
    %116 = vmatprep.subr.mxu0 0.0
    %117 = vmatpush1.msra.mxu0 0.0
    %118 = vmatprep.subr.mxu0 0.0
    %119 = vmatpush1.msra.mxu0 0.0
    %120 = vmatprep.subr.mxu0 0.0
    %121 = vmatpush1.msra.mxu0 0.0
    %122 = vmatprep.mubr.f32.mxu0 0.0
    %123 = vmatmul.mubr.f32.gmra.mrb[0].mxu0 %v53
    %v124 = vpop.f32.mrb[0].mxu0
    %v125 = vadd.f32 %v49, %v124
    %v126 = vpop.f32.mrb[0].mxu0
    %127 = vmatprep.mubr.f32.mxu0 0.0
    %128 = vmatmul.mubr.f32.gmra.mrb[0].mxu0 %v56
    %v129 = vpop.f32.mrb[0].mxu0
    %v130 = vadd.f32 %v49, %v129
    %v131 = vpop.f32.mrb[0].mxu0
    %132 = vdwg.mxu0
    %v133 = vmax.f32 %v125, 0.0
    %v134 = vmax.f32 %v130, 0.0
    %v135 = vld [vmem:[%s3] sm:$0xff]
    %v136 = vld [vmem:[%s3 + $0x8] sm:$0xff]
    %v137 = vld [vmem:[%s3 + $0x10] sm:$0xff]
    %v138 = vld [vmem:[%s3 + $0x18] sm:$0xff]
    %v139 = vld [vmem:[%s4] sm:$0x1]
    %v141 = vlaneseq
    %v142 = vshrl.u32 %v141, 7
    %v143 = vsub.s32 0, %v142
    %v144 = vrot.slane %v139, %v143
    %vm146 = vcmask 261120
    %v148 = vsel %vm146, %v133, 0
    %v151 = vsel %vm146, %v134, 0
    %153 = vmatprep.subr.mxu0 0.0
    %154 = vmatpush1.msra.mxu0 %v135
    %155 = vmatprep.subr.mxu0 0.0
    %156 = vmatpush1.msra.mxu0 %v136
    %157 = vmatprep.subr.mxu0 0.0
    %158 = vmatpush1.msra.mxu0 %v137
    %159 = vmatprep.subr.mxu0 0.0
    %160 = vmatpush1.msra.mxu0 %v138
    %161 = vmatprep.subr.mxu0 0.0
    %162 = vmatpush1.msra.mxu0 0.0
    %163 = vmatprep.subr.mxu0 0.0
    %164 = vmatpush1.msra.mxu0 0.0
    %165 = vmatprep.subr.mxu0 0.0
    %166 = vmatpush1.msra.mxu0 0.0
    %167 = vmatprep.subr.mxu0 0.0
    %168 = vmatpush1.msra.mxu0 0.0
    %169 = vmatprep.subr.mxu0 0.0
    %170 = vmatpush1.msra.mxu0 0.0
    %171 = vmatprep.subr.mxu0 0.0
    %172 = vmatpush1.msra.mxu0 0.0
    %173 = vmatprep.subr.mxu0 0.0
    %174 = vmatpush1.msra.mxu0 0.0
    %175 = vmatprep.subr.mxu0 0.0
    %176 = vmatpush1.msra.mxu0 0.0
    %177 = vmatprep.subr.mxu0 0.0
    %178 = vmatpush1.msra.mxu0 0.0
    %179 = vmatprep.subr.mxu0 0.0
    %180 = vmatpush1.msra.mxu0 0.0
    %181 = vmatprep.subr.mxu0 0.0
    %182 = vmatpush1.msra.mxu0 0.0
    %183 = vmatprep.subr.mxu0 0.0
    %184 = vmatpush1.msra.mxu0 0.0
    %185 = vmatprep.subr.mxu0 0.0
    %186 = vmatpush1.msra.mxu0 0.0
    %187 = vmatprep.subr.mxu0 0.0
    %188 = vmatpush1.msra.mxu0 0.0
    %189 = vmatprep.subr.mxu0 0.0
    %190 = vmatpush1.msra.mxu0 0.0
    %191 = vmatprep.subr.mxu0 0.0
    %192 = vmatpush1.msra.mxu0 0.0
    %193 = vmatprep.subr.mxu0 0.0
    %194 = vmatpush1.msra.mxu0 0.0
    %195 = vmatprep.subr.mxu0 0.0
    %196 = vmatpush1.msra.mxu0 0.0
    %197 = vmatprep.subr.mxu0 0.0
    %198 = vmatpush1.msra.mxu0 0.0
    %199 = vmatprep.subr.mxu0 0.0
    %200 = vmatpush1.msra.mxu0 0.0
    %201 = vmatprep.subr.mxu0 0.0
    %202 = vmatpush1.msra.mxu0 0.0
    %203 = vmatprep.subr.mxu0 0.0
    %204 = vmatpush1.msra.mxu0 0.0
    %205 = vmatprep.subr.mxu0 0.0
    %206 = vmatpush1.msra.mxu0 0.0
    %207 = vmatprep.subr.mxu0 0.0
    %208 = vmatpush1.msra.mxu0 0.0
    %209 = vmatprep.subr.mxu0 0.0
    %210 = vmatpush1.msra.mxu0 0.0
    %211 = vmatprep.subr.mxu0 0.0
    %212 = vmatpush1.msra.mxu0 0.0
    %213 = vmatprep.subr.mxu0 0.0
    %214 = vmatpush1.msra.mxu0 0.0
    %215 = vmatprep.subr.mxu0 0.0
    %216 = vmatpush1.msra.mxu0 0.0
    %217 = vmatprep.mubr.f32.mxu0 0.0
    %218 = vmatmul.mubr.f32.gmra.mrb[0].mxu0 %v148
    %v219 = vpop.f32.mrb[0].mxu0
    %v220 = vadd.f32 %v144, %v219
    %v221 = vpop.f32.mrb[0].mxu0
    %222 = vmatprep.mubr.f32.mxu0 0.0
    %223 = vmatmul.mubr.f32.gmra.mrb[0].mxu0 %v151
    %v224 = vpop.f32.mrb[0].mxu0
    %v225 = vadd.f32 %v144, %v224
    %v226 = vpop.f32.mrb[0].mxu0
    %227 = vdwg.mxu0
    %v228 = vmax.f32 %v220, 0.0
    %v229 = vmax.f32 %v225, 0.0
    %v230 = vld [vmem:[%s5] sm:$0xff]
    %v231 = vld [vmem:[%s5 + $0x8] sm:$0xff]
    %v232 = vld [vmem:[%s5 + $0x10] sm:$0xff]
    %v233 = vld [vmem:[%s5 + $0x18] sm:$0xff]
    %v234 = vld [vmem:[%s6] sm:$0x1]
    %v236 = vlaneseq
    %v237 = vshrl.u32 %v236, 7
    %v238 = vsub.s32 0, %v237
    %v239 = vrot.slane %v234, %v238
    %v242 = vsel %vm146, %v228, 0
    %v245 = vsel %vm146, %v229, 0
    %247 = vmatprep.subr.mxu0 0.0
    %248 = vmatpush1.msra.mxu0 %v230
    %249 = vmatprep.subr.mxu0 0.0
    %250 = vmatpush1.msra.mxu0 %v231
    %251 = vmatprep.subr.mxu0 0.0
    %252 = vmatpush1.msra.mxu0 %v232
    %253 = vmatprep.subr.mxu0 0.0
    %254 = vmatpush1.msra.mxu0 %v233
    %255 = vmatprep.subr.mxu0 0.0
    %256 = vmatpush1.msra.mxu0 0.0
    %257 = vmatprep.subr.mxu0 0.0
    %258 = vmatpush1.msra.mxu0 0.0
    %259 = vmatprep.subr.mxu0 0.0
    %260 = vmatpush1.msra.mxu0 0.0
    %261 = vmatprep.subr.mxu0 0.0
    %262 = vmatpush1.msra.mxu0 0.0
    %263 = vmatprep.subr.mxu0 0.0
    %264 = vmatpush1.msra.mxu0 0.0
    %265 = vmatprep.subr.mxu0 0.0
    %266 = vmatpush1.msra.mxu0 0.0
    %267 = vmatprep.subr.mxu0 0.0
    %268 = vmatpush1.msra.mxu0 0.0
    %269 = vmatprep.subr.mxu0 0.0
    %270 = vmatpush1.msra.mxu0 0.0
    %271 = vmatprep.subr.mxu0 0.0
    %272 = vmatpush1.msra.mxu0 0.0
    %273 = vmatprep.subr.mxu0 0.0
    %274 = vmatpush1.msra.mxu0 0.0
    %275 = vmatprep.subr.mxu0 0.0
    %276 = vmatpush1.msra.mxu0 0.0
    %277 = vmatprep.subr.mxu0 0.0
    %278 = vmatpush1.msra.mxu0 0.0
    %279 = vmatprep.subr.mxu0 0.0
    %280 = vmatpush1.msra.mxu0 0.0
    %281 = vmatprep.subr.mxu0 0.0
    %282 = vmatpush1.msra.mxu0 0.0
    %283 = vmatprep.subr.mxu0 0.0
    %284 = vmatpush1.msra.mxu0 0.0
    %285 = vmatprep.subr.mxu0 0.0
    %286 = vmatpush1.msra.mxu0 0.0
    %287 = vmatprep.subr.mxu0 0.0
    %288 = vmatpush1.msra.mxu0 0.0
    %289 = vmatprep.subr.mxu0 0.0
    %290 = vmatpush1.msra.mxu0 0.0
    %291 = vmatprep.subr.mxu0 0.0
    %292 = vmatpush1.msra.mxu0 0.0
    %293 = vmatprep.subr.mxu0 0.0
    %294 = vmatpush1.msra.mxu0 0.0
    %295 = vmatprep.subr.mxu0 0.0
    %296 = vmatpush1.msra.mxu0 0.0
    %297 = vmatprep.subr.mxu0 0.0
    %298 = vmatpush1.msra.mxu0 0.0
    %299 = vmatprep.subr.mxu0 0.0
    %300 = vmatpush1.msra.mxu0 0.0
    %301 = vmatprep.subr.mxu0 0.0
    %302 = vmatpush1.msra.mxu0 0.0
    %303 = vmatprep.subr.mxu0 0.0
    %304 = vmatpush1.msra.mxu0 0.0
    %305 = vmatprep.subr.mxu0 0.0
    %306 = vmatpush1.msra.mxu0 0.0
    %307 = vmatprep.subr.mxu0 0.0
    %308 = vmatpush1.msra.mxu0 0.0
    %309 = vmatprep.subr.mxu0 0.0
    %310 = vmatpush1.msra.mxu0 0.0
    %311 = vmatprep.mubr.f32.mxu0 0.0
    %312 = vmatmul.mubr.f32.gmra.mrb[0].mxu0 %v242
    %v313 = vpop.f32.mrb[0].mxu0
    %v314 = vadd.f32 %v239, %v313
    %v315 = vpop.f32.mrb[0].mxu0
    %316 = vmatprep.mubr.f32.mxu0 0.0
    %317 = vmatmul.mubr.f32.gmra.mrb[0].mxu0 %v245
    %v318 = vpop.f32.mrb[0].mxu0
    %v319 = vadd.f32 %v239, %v318
    %v320 = vpop.f32.mrb[0].mxu0
    %321 = vdwg.mxu0
    %vm322 = vcmask 64512
    %323 = vst.msk [vmem:[%s7] sm:$0xff] %vm322, %v314
    %324 = vst.msk [vmem:[%s7 + $0x8] sm:$0xff] %vm322, %v319
    // Predicated region
    $region34: #{model_mlp_forward.1} parent=1 // pred_check
      _
    $region35: #{model_mlp_forward.1} parent=1 // pred_check_branch
      %326 = sbr.rel (0) target = $region37
    $region36: #{model_mlp_forward.1} parent=1 // pred_region
      _
    $region37: #{model_mlp_forward.1} parent=1 // pred_fallthru
      _
    // Predicated region
    $region38: #{model_mlp_forward.1} parent=1 // pred_check
      _
    $region39: #{model_mlp_forward.1} parent=1 // pred_check_branch
      %328 = sbr.rel (0) target = $region41
    $region40: #{model_mlp_forward.1} parent=1 // pred_region
      _
    $region41: #{model_mlp_forward.1} parent=1 // pred_fallthru
      _
    %329 = vsyncpa [#allocation3], 1

</llo_original>
